<compile_context>
chip_gen: v7x
topology: tpu7x:2x2x1
jax: 0.10.0
libtpu: 0.0.40
codegen_flags: <defaults>
</compile_context>

<pallas_src>
import functools

import jax
import jax.numpy as jnp
from jax import lax
from jax.experimental import pallas as pl
from jax.experimental.pallas import tpu as pltpu

_VMEM_LIMIT_BYTES = 40 * 1024 * 1024   # v7x-safe (64 MiB phys), fine on v5e/v6e
_TARGET_TILE_BYTES = 4 * 1024 * 1024   # streamed tile budget per buffer (f32 accounting)
_FUSED_SLAB_BYTES = 4 * 1024 * 1024    # resident channel-slab budget (f32 accounting)
_MAX_UNROLL_GROUPS = 32                # max 128-lane groups unrolled in the stats kernel
_MAX_FUSED_BATCH = 128                 # cap trace-time unroll over N in the fused kernel


def _round_down(x, m):
    return (x // m) * m


def _largest_aligned_divisor(extent, align, cap):
    """Largest t dividing `extent` with t % align == 0 and t <= cap (fallback: extent)."""
    if extent % align != 0:
        return extent
    cap = min(cap, extent)
    if cap < align:
        return align
    t = _round_down(cap, align)
    while t >= align:
        if extent % t == 0:
            return t
        t -= align
    return extent


# ---------------------------------------------------------------------------
# Path A: single-pass fused kernel.  One grid step per channel tile; the whole
# (N, c_tile, HW) slab is VMEM-resident, so x is read from HBM exactly once.
# ---------------------------------------------------------------------------
def _fused_kernel(x_ref, gain_ref, bias_ref, o_ref, *, eps, inv_count, n_batch):
    # Per-channel sum / sum-of-squares over all batches and spatial positions.
    x0 = x_ref[0].astype(jnp.float32)                         # (c_tile, HW)
    s = jnp.sum(x0, axis=1, keepdims=True)
    q = jnp.sum(x0 * x0, axis=1, keepdims=True)
    for n in range(1, n_batch):
        xn = x_ref[n].astype(jnp.float32)
        s = s + jnp.sum(xn, axis=1, keepdims=True)
        q = q + jnp.sum(xn * xn, axis=1, keepdims=True)
    mean = s * inv_count
    var = jnp.maximum(q * inv_count - mean * mean, 0.0)       # biased var (manual_bn formula)
    scale = lax.rsqrt(var + eps) * gain_ref[...]               # (c_tile, 1)
    shift = mean * scale - bias_ref[...]
    # Apply: re-reads the VMEM-resident slab, no extra HBM traffic.
    for n in range(n_batch):
        xn = x_ref[n].astype(jnp.float32)
        o_ref[n] = (xn * scale - shift).astype(o_ref.dtype)


# ---------------------------------------------------------------------------
# Path B, pass 1: per-(n, channel-tile) partial stats, accumulated over the
# spatial grid axis in a lane-dense (c_tile, 128) scratch.  Output is one packed
# (c_tile, 2) block (sum | sumsq) written once, on the last spatial step.
# ---------------------------------------------------------------------------
def _stats_kernel(x_ref, stat_ref, sum_sc, sq_sc, *, hw, hw_tile):
    k = pl.program_id(2)

    @pl.when(k == 0)
    def _init():
        sum_sc[...] = jnp.zeros_like(sum_sc)
        sq_sc[...] = jnp.zeros_like(sq_sc)

    xf = x_ref[...].astype(jnp.float32)                        # (c_tile, hw_tile)
    if hw % hw_tile != 0:
        # cdiv grid: zero out the padded tail lanes of the last spatial block.
        lane = lax.broadcasted_iota(jnp.int32, xf.shape, 1)
        xf = jnp.where(lane < hw - k * hw_tile, xf, 0.0)

    ngroups = hw_tile // 128
    if hw_tile % 128 == 0 and 1 <= ngroups <= _MAX_UNROLL_GROUPS:
        # Lane-dense accumulation: per-step pure VPU adds of 128-lane groups;
        # the single XLU cross-lane reduce is deferred to the final step.
        ps = xf[:, 0:128]
        pq = ps * ps
        for g in range(1, ngroups):
            seg = xf[:, g * 128:(g + 1) * 128]
            ps = ps + seg
            pq = pq + seg * seg
        sum_sc[...] += ps
        sq_sc[...] += pq
    else:
        # Small or very wide spatial tiles: let Mosaic do the lane reduction.
        sum_sc[:, 0:1] += jnp.sum(xf, axis=1, keepdims=True)
        sq_sc[:, 0:1] += jnp.sum(xf * xf, axis=1, keepdims=True)

    @pl.when(k == pl.num_programs(2) - 1)
    def _finalize():
        stat_ref[:, 0:1] = jnp.sum(sum_sc[...], axis=1, keepdims=True)
        stat_ref[:, 1:2] = jnp.sum(sq_sc[...], axis=1, keepdims=True)


# ---------------------------------------------------------------------------
# Path B, pass 2: fused normalize + affine with precomputed per-channel
# scale/shift -- a single broadcasted multiply-subtract on each streamed tile.
# ---------------------------------------------------------------------------
def _apply_kernel(x_ref, scale_ref, shift_ref, o_ref):
    xf = x_ref[...].astype(jnp.float32)                        # (c_tile, hw_tile)
    o_ref[...] = (xf * scale_ref[...] - shift_ref[...]).astype(o_ref.dtype)


def batch_norm_train(x_nchw, gain, bias, *, eps=1e-5, force_two_pass=False):
    """Training-mode batch norm matching manual_bn / F.batch_norm(..., training=True).

    x_nchw: (N, C, H, W); gain, bias: (C,).  Returns y with x's shape/dtype.
    """
    N, C, H, W = x_nchw.shape
    HW = H * W
    dtype = x_nchw.dtype
    itemsize = jnp.dtype(dtype).itemsize
    c_align = max(8, 32 // itemsize)          # packed-sublane alignment for x's dtype

    x3d = x_nchw.reshape(N, C, HW)            # free view, no transpose
    gain2 = gain.reshape(C, 1).astype(jnp.float32)
    bias2 = bias.reshape(C, 1).astype(jnp.float32)
    inv_count = 1.0 / float(N * HW)

    # ---------------- path A: single-pass fused -----------------------------
    slab_elems = _FUSED_SLAB_BYTES // 4       # f32 accounting
    per_channel = N * HW
    c_tile_f = 0
    if not force_two_pass and N <= _MAX_FUSED_BATCH:
        if C % c_align == 0:
            cap = slab_elems // per_channel
            if cap >= c_align:
                c_tile_f = _largest_aligned_divisor(C, c_align, cap)
        elif C * per_channel <= slab_elems:
            c_tile_f = C                      # full extent is always a legal block dim
    if c_tile_f:
        y3d = pl.pallas_call(
            functools.partial(_fused_kernel, eps=eps, inv_count=inv_count, n_batch=N),
            out_shape=jax.ShapeDtypeStruct((N, C, HW), dtype),
            grid_spec=pltpu.PrefetchScalarGridSpec(
                num_scalar_prefetch=0,
                grid=(C // c_tile_f,),
                in_specs=[pl.BlockSpec((N, c_tile_f, HW), lambda ci: (0, ci, 0)),
                          pl.BlockSpec((c_tile_f, 1), lambda ci: (ci, 0)),
                          pl.BlockSpec((c_tile_f, 1), lambda ci: (ci, 0))],
                out_specs=pl.BlockSpec((N, c_tile_f, HW), lambda ci: (0, ci, 0)),
            ),
            compiler_params=pltpu.CompilerParams(
                dimension_semantics=("parallel",),
                vmem_limit_bytes=_VMEM_LIMIT_BYTES),
        )(x3d, gain2, bias2)
        return y3d.reshape(N, C, H, W)

    # ---------------- path B: two-pass streaming -----------------------------
    target_elems = _TARGET_TILE_BYTES // 4
    if C % c_align == 0:
        c_tile = _largest_aligned_divisor(C, c_align, 256)
    else:
        c_tile = C                                            # full extent (always legal)
    hw_cap = max(128, _round_down(max(target_elems // c_tile, 128), 128))
    if HW < 128:
        hw_tile = HW                                          # full extent
    elif HW % 128 == 0:
        hw_tile = _largest_aligned_divisor(HW, 128, hw_cap)   # exact divisor, no mask
    else:
        hw_tile = min(_round_down(HW, 128), hw_cap)           # cdiv grid + masked tail

    grid = (N, C // c_tile, pl.cdiv(HW, hw_tile))

    # --- pass 1: packed per-(n, channel) partial stats -----------------------
    stats = pl.pallas_call(
        functools.partial(_stats_kernel, hw=HW, hw_tile=hw_tile),
        out_shape=jax.ShapeDtypeStruct((N, C, 2), jnp.float32),
        grid_spec=pltpu.PrefetchScalarGridSpec(
            num_scalar_prefetch=0,
            grid=grid,
            in_specs=[pl.BlockSpec((None, c_tile, hw_tile),
                                   lambda n, ci, k: (n, ci, k))],
            out_specs=pl.BlockSpec((None, c_tile, 2),
                                   lambda n, ci, k: (n, ci, 0)),
            scratch_shapes=[pltpu.VMEM((c_tile, 128), jnp.float32),
                            pltpu.VMEM((c_tile, 128), jnp.float32)],
        ),
        compiler_params=pltpu.CompilerParams(
            dimension_semantics=("parallel", "parallel", "arbitrary"),
            vmem_limit_bytes=_VMEM_LIMIT_BYTES),
    )(x3d)

    # Tiny per-channel glue (only on the large-tensor path, where it is noise
    # relative to the streaming passes; small tensors take the zero-glue fused path).
    tot = jnp.sum(stats, axis=0)                              # (C, 2)
    mean = tot[:, 0:1] * inv_count
    var = jnp.maximum(tot[:, 1:2] * inv_count - mean * mean, 0.0)
    scale = lax.rsqrt(var + eps) * gain2
    shift = mean * scale - bias2

    # --- pass 2: fused normalize + affine ------------------------------------
    y3d = pl.pallas_call(
        _apply_kernel,
        out_shape=jax.ShapeDtypeStruct((N, C, HW), dtype),
        grid_spec=pltpu.PrefetchScalarGridSpec(
            num_scalar_prefetch=0,
            grid=grid,
            in_specs=[pl.BlockSpec((None, c_tile, hw_tile),
                                   lambda n, ci, k: (n, ci, k)),
                      pl.BlockSpec((c_tile, 1), lambda n, ci, k: (ci, 0)),
                      pl.BlockSpec((c_tile, 1), lambda n, ci, k: (ci, 0))],
            out_specs=pl.BlockSpec((None, c_tile, hw_tile),
                                   lambda n, ci, k: (n, ci, k)),
        ),
        compiler_params=pltpu.CompilerParams(
            dimension_semantics=("parallel", "parallel", "parallel"),
            vmem_limit_bytes=_VMEM_LIMIT_BYTES),
    )(x3d, scale, shift)

    return y3d.reshape(N, C, H, W)
    # TODO(synk): running-stat (stored_mean/stored_var momentum EMA) buffer update is a
    # training side effect, not part of the returned forward value; omitted.  The v7x
    # two-level spatial split of pass 1 for extra megacore parallelism is also omitted.


if __name__ == "__main__":
    key = jax.random.PRNGKey(0)
    k1, k2 = jax.random.split(key)

    def ref_bn(x, gain, bias, eps=1e-5):
        xf = x.astype(jnp.float32)
        m = jnp.mean(xf, axis=(0, 2, 3), keepdims=True)
        v = jnp.mean(xf * xf, axis=(0, 2, 3), keepdims=True) - m * m
        C = x.shape[1]
        out = (xf - m) * lax.rsqrt(v + eps) * gain.reshape(1, C, 1, 1) \
              + bias.reshape(1, C, 1, 1)
        return out.astype(x.dtype)

    # 1) Small shape, module-default parameters (gain=1, bias=0) -> fused single-pass path.
    x1 = jax.random.normal(k1, (2, 4, 16, 16), dtype=jnp.float32)
    g1 = jnp.ones((4,), dtype=jnp.float32)
    b1 = jnp.zeros((4,), dtype=jnp.float32)
    y1 = batch_norm_train(x1, g1, b1, eps=1e-5)
    jax.block_until_ready(y1)
    assert jnp.max(jnp.abs(y1 - ref_bn(x1, g1, b1))) < 1e-4

    # 2) Non-128-multiple spatial extent + non-trivial affine -> two-pass streaming path
    #    (exercises the cdiv grid, masked tail lanes and lane-dense scratch accumulator).
    x2 = jax.random.normal(k2, (2, 16, 20, 20), dtype=jnp.float32)
    g2 = 1.0 + 0.1 * jnp.arange(16, dtype=jnp.float32)
    b2 = 0.05 * jnp.arange(16, dtype=jnp.float32)
    y2 = batch_norm_train(x2, g2, b2, eps=1e-5, force_two_pass=True)
    jax.block_until_ready(y2)
    assert jnp.max(jnp.abs(y2 - ref_bn(x2, g2, b2))) < 1e-4

    print("KERNEL_OK")
</pallas_src>

<mosaic_0001>
module attributes {stable_mosaic.version = 11 : i64} {
  func.func @_fused_kernel(%arg0: i32, %arg1: memref<2x4x256xf32, #tpu.memory_space<vmem>>, %arg2: memref<4x1xf32, #tpu.memory_space<vmem>>, %arg3: memref<4x1xf32, #tpu.memory_space<vmem>>, %arg4: memref<2x4x256xf32, #tpu.memory_space<vmem>>) attributes {dimension_semantics = [#tpu.dimension_semantics<parallel>], iteration_bounds = array<i64: 1>, scalar_prefetch = 0 : i64, scratch_operands = 0 : i64, tpu.core_type = #tpu.core_type<tc>, window_params = [{transform_indices = @transform_0, window_bounds = array<i64: 2, 4, 256>}, {transform_indices = @transform_1, window_bounds = array<i64: 4, 1>}, {transform_indices = @transform_2, window_bounds = array<i64: 4, 1>}, {transform_indices = @transform_3, window_bounds = array<i64: 2, 4, 256>}]} {
    %c0 = arith.constant 0 : index
    %c0_0 = arith.constant 0 : index
    %c0_1 = arith.constant 0 : index
    %0 = vector.load %arg1[%c0, %c0_0, %c0_1] : memref<2x4x256xf32, #tpu.memory_space<vmem>>, vector<1x4x256xf32>
    %1 = vector.shape_cast %0 : vector<1x4x256xf32> to vector<4x256xf32>
    %cst = arith.constant dense<0.000000e+00> : vector<4xf32>
    %2 = vector.multi_reduction <add>, %1, %cst [1] : vector<4x256xf32> to vector<4xf32>
    %3 = vector.shape_cast %2 : vector<4xf32> to vector<4x1xf32>
    %4 = arith.mulf %1, %1 : vector<4x256xf32>
    %cst_2 = arith.constant dense<0.000000e+00> : vector<4xf32>
    %5 = vector.multi_reduction <add>, %4, %cst_2 [1] : vector<4x256xf32> to vector<4xf32>
    %6 = vector.shape_cast %5 : vector<4xf32> to vector<4x1xf32>
    %c1 = arith.constant 1 : index
    %c0_3 = arith.constant 0 : index
    %c0_4 = arith.constant 0 : index
    %7 = vector.load %arg1[%c1, %c0_3, %c0_4] : memref<2x4x256xf32, #tpu.memory_space<vmem>>, vector<1x4x256xf32>
    %8 = vector.shape_cast %7 : vector<1x4x256xf32> to vector<4x256xf32>
    %cst_5 = arith.constant dense<0.000000e+00> : vector<4xf32>
    %9 = vector.multi_reduction <add>, %8, %cst_5 [1] : vector<4x256xf32> to vector<4xf32>
    %10 = vector.shape_cast %9 : vector<4xf32> to vector<4x1xf32>
    %11 = arith.addf %3, %10 : vector<4x1xf32>
    %12 = arith.mulf %8, %8 : vector<4x256xf32>
    %cst_6 = arith.constant dense<0.000000e+00> : vector<4xf32>
    %13 = vector.multi_reduction <add>, %12, %cst_6 [1] : vector<4x256xf32> to vector<4xf32>
    %14 = vector.shape_cast %13 : vector<4xf32> to vector<4x1xf32>
    %15 = arith.addf %6, %14 : vector<4x1xf32>
    %cst_7 = arith.constant 0.001953125 : f32
    %16 = vector.broadcast %cst_7 : f32 to vector<4x1xf32>
    %17 = arith.mulf %11, %16 : vector<4x1xf32>
    %cst_8 = arith.constant 0.001953125 : f32
    %18 = vector.broadcast %cst_8 : f32 to vector<4x1xf32>
    %19 = arith.mulf %15, %18 : vector<4x1xf32>
    %20 = arith.mulf %17, %17 : vector<4x1xf32>
    %21 = arith.subf %19, %20 : vector<4x1xf32>
    %cst_9 = arith.constant 0.000000e+00 : f32
    %22 = vector.broadcast %cst_9 : f32 to vector<4x1xf32>
    %23 = arith.maximumf %21, %22 : vector<4x1xf32>
    %cst_10 = arith.constant 9.99999974E-6 : f32
    %24 = vector.broadcast %cst_10 : f32 to vector<4x1xf32>
    %25 = arith.addf %23, %24 : vector<4x1xf32>
    %26 = math.rsqrt %25 : vector<4x1xf32>
    %c0_11 = arith.constant 0 : index
    %c0_12 = arith.constant 0 : index
    %27 = vector.load %arg2[%c0_11, %c0_12] : memref<4x1xf32, #tpu.memory_space<vmem>>, vector<4x1xf32>
    %28 = arith.mulf %26, %27 : vector<4x1xf32>
    %29 = arith.mulf %17, %28 : vector<4x1xf32>
    %c0_13 = arith.constant 0 : index
    %c0_14 = arith.constant 0 : index
    %30 = vector.load %arg3[%c0_13, %c0_14] : memref<4x1xf32, #tpu.memory_space<vmem>>, vector<4x1xf32>
    %31 = arith.subf %29, %30 : vector<4x1xf32>
    %c0_15 = arith.constant 0 : index
    %c0_16 = arith.constant 0 : index
    %c0_17 = arith.constant 0 : index
    %32 = vector.load %arg1[%c0_15, %c0_16, %c0_17] : memref<2x4x256xf32, #tpu.memory_space<vmem>>, vector<1x4x256xf32>
    %33 = vector.shape_cast %32 : vector<1x4x256xf32> to vector<4x256xf32>
    %34 = vector.broadcast %28 : vector<4x1xf32> to vector<4x256xf32>
    %35 = arith.mulf %33, %34 : vector<4x256xf32>
    %36 = vector.broadcast %31 : vector<4x1xf32> to vector<4x256xf32>
    %37 = arith.subf %35, %36 : vector<4x256xf32>
    %c0_18 = arith.constant 0 : index
    %c0_19 = arith.constant 0 : index
    %c0_20 = arith.constant 0 : index
    %38 = vector.load %arg4[%c0_18, %c0_19, %c0_20] : memref<2x4x256xf32, #tpu.memory_space<vmem>>, vector<1x4x256xf32>
    %39 = vector.shape_cast %38 : vector<1x4x256xf32> to vector<4x256xf32>
    %40 = vector.shape_cast %37 : vector<4x256xf32> to vector<1x4x256xf32>
    tpu.vector_store %arg4[%c0_18, %c0_19, %c0_20], %40 {strides = array<i32>} : memref<2x4x256xf32, #tpu.memory_space<vmem>>, vector<1x4x256xf32>,
    %c1_21 = arith.constant 1 : index
    %c0_22 = arith.constant 0 : index
    %c0_23 = arith.constant 0 : index
    %41 = vector.load %arg1[%c1_21, %c0_22, %c0_23] : memref<2x4x256xf32, #tpu.memory_space<vmem>>, vector<1x4x256xf32>
    %42 = vector.shape_cast %41 : vector<1x4x256xf32> to vector<4x256xf32>
    %43 = vector.broadcast %28 : vector<4x1xf32> to vector<4x256xf32>
    %44 = arith.mulf %42, %43 : vector<4x256xf32>
    %45 = vector.broadcast %31 : vector<4x1xf32> to vector<4x256xf32>
    %46 = arith.subf %44, %45 : vector<4x256xf32>
    %c1_24 = arith.constant 1 : index
    %c0_25 = arith.constant 0 : index
    %c0_26 = arith.constant 0 : index
    %47 = vector.load %arg4[%c1_24, %c0_25, %c0_26] : memref<2x4x256xf32, #tpu.memory_space<vmem>>, vector<1x4x256xf32>
    %48 = vector.shape_cast %47 : vector<1x4x256xf32> to vector<4x256xf32>
    %49 = vector.shape_cast %46 : vector<4x256xf32> to vector<1x4x256xf32>
    tpu.vector_store %arg4[%c1_24, %c0_25, %c0_26], %49 {strides = array<i32>} : memref<2x4x256xf32, #tpu.memory_space<vmem>>, vector<1x4x256xf32>,
    return
  }
  func.func @transform_0(%arg0: i32) -> (i32, i32, i32) {
    %c0_i32 = arith.constant 0 : i32
    %c0_i32_0 = arith.constant 0 : i32
    %c0_i32_1 = arith.constant 0 : i32
    return %c0_i32, %arg0, %c0_i32_0 : i32, i32, i32
  }
  func.func @transform_1(%arg0: i32) -> (i32, i32) {
    %c0_i32 = arith.constant 0 : i32
    %c0_i32_0 = arith.constant 0 : i32
    return %arg0, %c0_i32 : i32, i32
  }
  func.func @transform_2(%arg0: i32) -> (i32, i32) {
    %c0_i32 = arith.constant 0 : i32
    %c0_i32_0 = arith.constant 0 : i32
    return %arg0, %c0_i32 : i32, i32
  }
  func.func @transform_3(%arg0: i32) -> (i32, i32, i32) {
    %c0_i32 = arith.constant 0 : i32
    %c0_i32_0 = arith.constant 0 : i32
    %c0_i32_1 = arith.constant 0 : i32
    return %c0_i32, %arg0, %c0_i32_0 : i32, i32, i32
  }
}

</mosaic_0001>

<llo_original>
// kernel: tpu_custom_call.1
$region0: #{tpu_custom_call.1}
  #allocation0 [shape = 'u32[]', space=smem, size = 0x4, offset = 0x4, fixed_abs, tag = 'smem constant byte address 0x4 - core index']
  #allocation1 [shape = 'u32[144,128]{1,0:T(1,128)}', space=vmem, size = 0x12000, scoped, tag = 'internal scratch']
  %s0 = inlined_call_operand.hbm [shape: f32[2,4,256], index: 0, kind: input, shape index: {}]
  %s1 = inlined_call_operand.vmem [shape: f32[4,1], index: 1, kind: input, shape index: {}]
  %s2 = inlined_call_operand.vmem [shape: f32[4,1], index: 2, kind: input, shape index: {}]
  %s3 = inlined_call_operand.hbm [shape: f32[2,4,256], index: 3, kind: output, shape index: {}]
  %s4 = sld [smem:[#allocation0]]
  $region26: #{tpu_custom_call.1} parent=0
    _
  %s6 = ssub.s32 1, %s4
  %s7 = scalar_select 0, %s6, %s4
  $region1: #{tpu_custom_call.1} parent=0
    #allocation2 [shape = 'u8[8192]{0}', space=vmem, size = 0x2000, scoped, tag = 'input window, operand 0, single buffered']
    #allocation3 [shape = 's32[1]{0}', space=sflag, size = 0x4, scoped, tag = 'scoped memory for tpu_custom_call.1']
    #allocation4 [shape = 's32[1]{0}', space=sflag, size = 0x4, scoped, tag = 'scoped memory for tpu_custom_call.1']
    #allocation5 [shape = 'u8[8192]{0}', space=vmem, size = 0x2000, scoped, tag = 'output window, operand 0, single buffered']
    %8 = vsyncpa [#allocation3], 0
    %9 = vsyncpa [#allocation4], 0
    // Predicated region
    $region2: #{tpu_custom_call.1} parent=1 // pred_check
      _
    $region3: #{tpu_custom_call.1} parent=1 // pred_check_branch
      %11 = sbr.rel (0) target = $region5
    $region4: #{tpu_custom_call.1} parent=1 // pred_region
      %s13 = ssub.s32 256, 256
      %14 = vsyncadd [#allocation3], %s13
      %s15 = sshll.u32 [#allocation2], 4
      %s16 = int_to_ptr.vmem [resolvable:$true] %s15
      %21 = dma.hbm_to_vmem [thread:$0]  %s0, 256, %s16, [#allocation3], 128, 128, 8
    $region5: #{tpu_custom_call.1} parent=1 // pred_fallthru
      _
    // Predicated region
    $region6: #{tpu_custom_call.1} parent=1 // pred_check
      _
    $region7: #{tpu_custom_call.1} parent=1 // pred_check_branch
      %23 = sbr.rel (0) target = $region9
    $region8: #{tpu_custom_call.1} parent=1 // pred_region
      _
    $region9: #{tpu_custom_call.1} parent=1 // pred_fallthru
      _
    // Predicated region
    $region10: #{tpu_custom_call.1} parent=1 // pred_check
      _
    $region11: #{tpu_custom_call.1} parent=1 // pred_check_branch
      %25 = sbr.rel (0) target = $region13
    $region12: #{tpu_custom_call.1} parent=1 // pred_region
      _
    $region13: #{tpu_custom_call.1} parent=1 // pred_fallthru
      _
    // Predicated region
    $region14: #{tpu_custom_call.1} parent=1 // pred_check
      _
    $region15: #{tpu_custom_call.1} parent=1 // pred_check_branch
      %27 = sbr.rel (0) target = $region17
    $region16: #{tpu_custom_call.1} parent=1 // pred_region
      %28 = dma.done [#allocation3], 256
    $region17: #{tpu_custom_call.1} parent=1 // pred_fallthru
      _
    %v29 = vld [vmem:[#allocation2] sm:$0xff]
    %v31 = vcombine.high %v29, %v29
    %vm33 = vcmask 1043456
    %v34 = vsel %vm33, %v29, 0.0
    %v35 = vsel %vm33, %v31, 0.0
    %v36 = vadd.f32 %v34, %v35
    %37 = vadd.xlane.f32.xlu0 %v36
    %v38 = vpop.xlane.xlu0 %37
    %v39 = vmul.f32 %v29, %v29
    %v41 = vcombine.high %v39, %v39
    %v43 = vsel %vm33, %v39, 0.0
    %v44 = vsel %vm33, %v41, 0.0
    %v45 = vadd.f32 %v43, %v44
    %46 = vadd.xlane.f32.xlu0 %v45
    %v47 = vpop.xlane.xlu0 %46
    %s48 = scalar_lea.vmem [#allocation2], 8
    %v49 = vld [vmem:[%s48] sm:$0xff]
    %v51 = vcombine.high %v49, %v49
    %v53 = vsel %vm33, %v49, 0.0
    %v54 = vsel %vm33, %v51, 0.0
    %v55 = vadd.f32 %v53, %v54
    %56 = vadd.xlane.f32.xlu0 %v55
    %v57 = vpop.xlane.xlu0 %56
    %v58 = vadd.f32 %v38, %v57
    %v59 = vmul.f32 %v49, %v49
    %v61 = vcombine.high %v59, %v59
    %v63 = vsel %vm33, %v59, 0.0
    %v64 = vsel %vm33, %v61, 0.0
    %v65 = vadd.f32 %v63, %v64
    %66 = vadd.xlane.f32.xlu0 %v65
    %v67 = vpop.xlane.xlu0 %66
    %v68 = vadd.f32 %v47, %v67
    %v69 = vmul.f32 %v58, 0.001953125
    %v70 = vmul.f32 %v68, 0.001953125
    %v71 = vmul.f32 %v69, %v69
    %v72 = vsub.f32 %v70, %v71
    %v73 = vmax.f32 %v72, 0.0
    %v74 = vadd.f32 %v73, 1e-05
    %v75 = vrsqrt.pop %v74
    %v76 = vld [vmem:[%s1] sm:$0xf]
    %v77 = vmul.f32 %v75, %v76
    %v78 = vmul.f32 %v69, %v77
    %v79 = vld [vmem:[%s2] sm:$0xf]
    %v80 = vsub.f32 %v78, %v79
    %82 = vset.pattern.permute.xlu0 0
    %83 = vperm.xlu0 %82, %v77
    %v84 = vpop.permute.xlu0 %83
    %v86 = vunpack.c.l.s4 839922192
    %v87 = vunpack.c.0.s8 %v86
    %v88 = vlaneseq
    %v89 = vshrl.u32 %v88, 7
    %v90 = vsub.s32 %v87, %v89
    %v91 = vrot.slane %v84, %v90
    %v93 = vmul.f32 %v29, %v91
    %95 = vset.pattern.permute.xlu0 0
    %96 = vperm.xlu0 %95, %v80
    %v97 = vpop.permute.xlu0 %96
    %v99 = vunpack.c.l.s4 839922192
    %v100 = vunpack.c.0.s8 %v99
    %v101 = vlaneseq
    %v102 = vshrl.u32 %v101, 7
    %v103 = vsub.s32 %v100, %v102
    %v104 = vrot.slane %v97, %v103
    %v106 = vsub.f32 %v93, %v104
    %107 = vst [vmem:[#allocation5] sm:$0xff] %v106
    %v108 = vld [vmem:[%s48] sm:$0xff]
    %v109 = vmul.f32 %v108, %v91
    %v110 = vsub.f32 %v109, %v104
    %s111 = scalar_lea.vmem [#allocation5], 8
    %112 = vst [vmem:[%s111] sm:$0xff] %v110
    // Predicated region
    $region18: #{tpu_custom_call.1} parent=1 // pred_check
      _
    $region19: #{tpu_custom_call.1} parent=1 // pred_check_branch
      %114 = sbr.rel (0) target = $region21
    $region20: #{tpu_custom_call.1} parent=1 // pred_region
      %s116 = ssub.s32 256, 256
      %117 = vsyncadd [#allocation4], %s116
      %s118 = sshll.u32 [#allocation5], 4
      %s119 = int_to_ptr.vmem [resolvable:$true] %s118
      %124 = dma.vmem_to_hbm [thread:$0]  %s119, 256, %s3, [#allocation4], 128, 128, 8
    $region21: #{tpu_custom_call.1} parent=1 // pred_fallthru
      _
    // Predicated region
    $region22: #{tpu_custom_call.1} parent=1 // pred_check
      _
    $region23: #{tpu_custom_call.1} parent=1 // pred_check_branch
      %126 = sbr.rel (0) target = $region25
    $region24: #{tpu_custom_call.1} parent=1 // pred_region
      %127 = dma.done [#allocation4], 256
    $region25: #{tpu_custom_call.1} parent=1 // pred_fallthru
      _
    %128 = vsyncpa [#allocation3], 1
    %129 = vsyncpa [#allocation4], 1

</llo_original>
